<compile_context>
chip_gen: v6e
topology: v6e:2x2x1
jax: 0.10.0
libtpu: 0.0.40
codegen_flags: <defaults>
</compile_context>

<pallas_src>
import jax
import jax.numpy as jnp
from jax import lax
from jax.experimental import pallas as pl
from jax.experimental.pallas import tpu as pltpu


def _round_up(x, m):
    return ((x + m - 1) // m) * m


def _pick_tile_m(B, S, target):
    """Pick tile_m so every m-tile maps to a contiguous, statically-sized
    window of the positional table: either a multiple of S (tile spans whole
    sequences) or an 8-aligned divisor of S (aligned slice of one sequence)."""
    M = B * S
    if S % 8 != 0:
        # Odd/tiny sequences: single full-M tile (full-dim block is allowed
        # regardless of 8-alignment).  Fine for small M.
        return M
    if S >= target:
        best = 8
        for d in range(8, min(S, target) + 1, 8):
            if S % d == 0:
                best = d
        return best
    k = max(1, min(B, target // S))
    return k * S


def _make_kernel(S, tile_m):
    reps = tile_m // S if tile_m % S == 0 else 0   # 0 => tile_m divides S

    def kernel(x_ref, pos_ref, w_ref, out_ref):
        """One grid step: one (m-tile, vocab-tile) of the logits.

        x_ref:   (TM, E)  bf16 gathered token embeddings (resident across j)
        pos_ref: (S, E)   bf16 positional table (resident for whole grid)
        w_ref:   (TV, E)  bf16 out_head weight tile, native nn.Linear layout
        out_ref: (TM, TV) f32/bf16 logits tile
        """
        # tok + pos.  Dropout / DummyTransformerBlock / DummyLayerNorm are
        # identities in eval mode.  The add is recomputed per vocab tile: it
        # is ~1/TV of the MXU work (hidden on the VPU slot) and keeps both
        # grid axes "parallel" (no scratch hoist needed).
        if reps:                                   # tile spans whole sequence(s)
            pos = pos_ref[...] if reps == 1 else jnp.tile(pos_ref[...], (reps, 1))
        else:                                      # aligned slice of one sequence
            off = pl.multiple_of((pl.program_id(0) * tile_m) % S, tile_m)
            pos = pos_ref[pl.ds(off, tile_m), :]
        x = x_ref[...] + pos

        # Output projection on the MXU: contract on E against the native
        # (V, E) nn.Linear layout (x @ W.T), f32 accumulation.
        out_ref[...] = lax.dot_general(
            x, w_ref[...],
            dimension_numbers=(((1,), (1,)), ((), ())),
            preferred_element_type=jnp.float32).astype(out_ref.dtype)

    return kernel


def dummy_gpt_forward(in_idx, tok_emb, pos_emb, out_w, *,
                      tile_m=512, tile_v=2048, out_dtype=jnp.float32):
    """in_idx: (B, S) int32 token ids.
    tok_emb: (V, E), pos_emb: (ctx, E), out_w: (V, E) (PyTorch Linear layout).
    Returns logits (B, S, V) in out_dtype (f32 default; bf16 halves writeback).
    """
    B, S = in_idx.shape
    V, E = out_w.shape
    M = B * S

    # Glue: one XLA gather for the token rows; everything downstream is bf16
    # (MXU-native, halves activation/weight HBM bytes).
    # TODO(synk): at real model sizes, fuse this gather into the kernel via
    # PrefetchScalarGridSpec(num_scalar_prefetch=1) + per-row DMA so the
    # (M, E) gathered activations never round-trip through HBM.
    x = tok_emb[in_idx].reshape(M, E).astype(jnp.bfloat16)     # (M, E)
    pos = pos_emb[:S].astype(jnp.bfloat16)                     # (S, E) resident
    w = out_w.astype(jnp.bfloat16)                             # (V, E) native

    # Tile selection (clamped so tiny problems become a single grid step).
    tm = _pick_tile_m(B, S, tile_m)
    tv = min(tile_v, _round_up(V, 128))

    m_pad = _round_up(M, tm)
    v_pad = _round_up(V, tv)
    if m_pad != M:
        x = jnp.pad(x, ((0, m_pad - M), (0, 0)))
    if v_pad != V:
        w = jnp.pad(w, ((0, v_pad - V), (0, 0)))
    n_m = m_pad // tm
    n_v = v_pad // tv

    out_bytes = jnp.dtype(out_dtype).itemsize

    # VMEM budgeting: double-buffered x / w / out tiles + resident pos.
    # Per-chip notes: default scoped VMEM is 16 MiB (v5e) / 32 MiB (v6e/v7x);
    # physical is 128 MiB on v5e/v6e but only 64 MiB per TC on v7x.  The
    # defaults here (tm=512, tv=2048) fit everywhere; on v6e you can raise
    # tiles toward ~100 MiB of scoped VMEM, on v7x keep the footprint well
    # below 64 MiB (prefer bf16 logits or tv<=2048).  If weight DMA is
    # exposed on v7x, add pipeline_mode=pl.Buffered(3) to the weight
    # BlockSpec only.
    vmem_need = 2 * (tm * E * 2 + tv * E * 2 + tm * tv * out_bytes) + S * E * 2
    vmem_limit = int(vmem_need * 1.3) if vmem_need * 1.3 > (16 << 20) else None

    cost = pl.CostEstimate(
        flops=2 * m_pad * E * v_pad,
        transcendentals=0,
        bytes_accessed=(x.size * 2                 # activations, streamed once
                        + pos.size * 2             # resident pos table
                        + w.size * 2 * n_m         # weight re-streamed per m-tile
                        + m_pad * v_pad * out_bytes),
    )

    logits = pl.pallas_call(
        _make_kernel(S, tm),
        out_shape=jax.ShapeDtypeStruct((m_pad, v_pad), out_dtype),
        grid_spec=pltpu.PrefetchScalarGridSpec(
            num_scalar_prefetch=0,
            grid=(n_m, n_v),                                   # vocab innermost
            in_specs=[
                pl.BlockSpec((tm, E), lambda i, j: (i, 0)),    # activations
                pl.BlockSpec((S, E), lambda i, j: (0, 0)),     # pos (resident)
                pl.BlockSpec((tv, E), lambda i, j: (j, 0)),    # weight tile
            ],
            out_specs=pl.BlockSpec((tm, tv), lambda i, j: (i, j)),
        ),
        compiler_params=pltpu.CompilerParams(
            dimension_semantics=("parallel", "parallel"),
            vmem_limit_bytes=vmem_limit,
        ),
        cost_estimate=cost,
    )(x, pos, w)

    return logits[:M, :V].reshape(B, S, V)


if __name__ == "__main__":
    # Small, deterministic config consistent with the module structure.
    cfg = {
        "vocab_size": 512,
        "context_length": 16,
        "emb_dim": 32,
        "n_heads": 4,
        "n_layers": 2,
        "drop_rate": 0.1,
        "qkv_bias": False,
    }
    B, S = 2, 8

    key = jax.random.PRNGKey(0)
    k_tok, k_pos, k_out, k_idx = jax.random.split(key, 4)

    tok_emb = jax.random.normal(k_tok, (cfg["vocab_size"], cfg["emb_dim"]),
                                dtype=jnp.float32) * 0.02
    pos_emb = jax.random.normal(k_pos, (cfg["context_length"], cfg["emb_dim"]),
                                dtype=jnp.float32) * 0.02
    # nn.Linear(emb_dim, vocab_size, bias=False) weight: (vocab, emb)
    out_w = jax.random.normal(k_out, (cfg["vocab_size"], cfg["emb_dim"]),
                              dtype=jnp.float32) * 0.02
    in_idx = jax.random.randint(k_idx, (B, S), 0, cfg["vocab_size"],
                                dtype=jnp.int32)

    # Default path: f32 logits (faithful to the PyTorch module output dtype).
    logits = dummy_gpt_forward(in_idx, tok_emb, pos_emb, out_w)
    logits = jax.block_until_ready(logits)
    assert logits.shape == (B, S, cfg["vocab_size"])

    # Reference: identical math (bf16 add, bf16-operand MXU matmul, f32 acc).
    x_bf = (tok_emb[in_idx].astype(jnp.bfloat16)
            + pos_emb[:S].astype(jnp.bfloat16)[None, :, :])
    ref = lax.dot_general(
        x_bf.reshape(B * S, cfg["emb_dim"]), out_w.astype(jnp.bfloat16),
        dimension_numbers=(((1,), (1,)), ((), ())),
        preferred_element_type=jnp.float32,
    ).reshape(B, S, cfg["vocab_size"])
    assert jnp.allclose(logits, ref, atol=1e-4, rtol=1e-4), \
        float(jnp.max(jnp.abs(logits - ref)))

    # bf16-logits perf option (halves the dominant output writeback stream).
    logits_bf16 = dummy_gpt_forward(in_idx, tok_emb, pos_emb, out_w,
                                    out_dtype=jnp.bfloat16)
    logits_bf16 = jax.block_until_ready(logits_bf16)
    assert logits_bf16.dtype == jnp.bfloat16
    assert jnp.allclose(logits_bf16.astype(jnp.float32), ref,
                        atol=1e-3, rtol=2e-2), \
        float(jnp.max(jnp.abs(logits_bf16.astype(jnp.float32) - ref)))

    print("KERNEL_OK")
</pallas_src>

<mosaic_0001>
module attributes {stable_mosaic.version = 11 : i64} {
  func.func @kernel(%arg0: i32, %arg1: i32, %arg2: memref<16x32xbf16, #tpu.memory_space<vmem>>, %arg3: memref<8x32xbf16, #tpu.memory_space<vmem>>, %arg4: memref<512x32xbf16, #tpu.memory_space<vmem>>, %arg5: memref<16x512xf32, #tpu.memory_space<vmem>>) attributes {dimension_semantics = [#tpu.dimension_semantics<parallel>, #tpu.dimension_semantics<parallel>], iteration_bounds = array<i64: 1, 1>, scalar_prefetch = 0 : i64, scratch_operands = 0 : i64, tpu.core_type = #tpu.core_type<tc>, window_params = [{transform_indices = @transform_0, window_bounds = array<i64: 16, 32>}, {pipeline_mode = #tpu.pipeline_mode<synchronous>, transform_indices = @transform_1, window_bounds = array<i64: 8, 32>}, {transform_indices = @transform_2, window_bounds = array<i64: 512, 32>}, {transform_indices = @transform_3, window_bounds = array<i64: 16, 512>}]} {
    %c0 = arith.constant 0 : index
    %c0_0 = arith.constant 0 : index
    %0 = vector.load %arg3[%c0, %c0_0] : memref<8x32xbf16, #tpu.memory_space<vmem>>, vector<8x32xbf16>
    %1 = tpu.concatenate %0, %0 in 0 : vector<8x32xbf16>, vector<8x32xbf16> -> vector<16x32xbf16>
    %c0_1 = arith.constant 0 : index
    %c0_2 = arith.constant 0 : index
    %2 = vector.load %arg2[%c0_1, %c0_2] : memref<16x32xbf16, #tpu.memory_space<vmem>>, vector<16x32xbf16>
    %3 = arith.addf %2, %1 : vector<16x32xbf16>
    %c0_3 = arith.constant 0 : index
    %c0_4 = arith.constant 0 : index
    %4 = vector.load %arg4[%c0_3, %c0_4] : memref<512x32xbf16, #tpu.memory_space<vmem>>, vector<512x32xbf16>
    %cst = arith.constant dense<0.000000e+00> : vector<16x512xf32>
    %5 = tpu.matmul %3, %4, %cst {dimension_numbers = #tpu.dot_dimension_numbers<[1], [1], [0], [0], [0, 0, 1, 0], [], []>} : vector<16x32xbf16>, vector<512x32xbf16>, vector<16x512xf32> -> vector<16x512xf32>
    %c0_5 = arith.constant 0 : index
    %c0_6 = arith.constant 0 : index
    %6 = vector.load %arg5[%c0_5, %c0_6] : memref<16x512xf32, #tpu.memory_space<vmem>>, vector<16x512xf32>
    tpu.vector_store %arg5[%c0_5, %c0_6], %5 {strides = array<i32>} : memref<16x512xf32, #tpu.memory_space<vmem>>, vector<16x512xf32>,
    return
  }
  func.func @transform_0(%arg0: i32, %arg1: i32) -> (i32, i32) {
    %c0_i32 = arith.constant 0 : i32
    %c0_i32_0 = arith.constant 0 : i32
    return %arg0, %c0_i32 : i32, i32
  }
  func.func @transform_1(%arg0: i32, %arg1: i32) -> (i32, i32) {
    %c0_i32 = arith.constant 0 : i32
    %c0_i32_0 = arith.constant 0 : i32
    %c0_i32_1 = arith.constant 0 : i32
    return %c0_i32, %c0_i32_0 : i32, i32
  }
  func.func @transform_2(%arg0: i32, %arg1: i32) -> (i32, i32) {
    %c0_i32 = arith.constant 0 : i32
    %c0_i32_0 = arith.constant 0 : i32
    return %arg1, %c0_i32 : i32, i32
  }
  func.func @transform_3(%arg0: i32, %arg1: i32) -> (i32, i32) {
    %c0_i32 = arith.constant 0 : i32
    return %arg0, %arg1 : i32, i32
  }
}

</mosaic_0001>

<llo_original>
// kernel: tpu_custom_call.1
$region0: #{tpu_custom_call.1}
  #allocation0 [shape = 'u32[]', space=smem, size = 0x4, offset = 0x4, fixed_abs, tag = 'smem constant byte address 0x4 - core index']
  #allocation1 [shape = 'u32[144,128]{1,0:T(1,128)}', space=vmem, size = 0x12000, scoped, tag = 'internal scratch']
  %s0 = inlined_call_operand.vmem [shape: bf16[16,32], index: 0, kind: input, shape index: {}]
  %s1 = inlined_call_operand.vmem [shape: bf16[8,32], index: 1, kind: input, shape index: {}]
  %s2 = inlined_call_operand.vmem [shape: bf16[512,32], index: 2, kind: input, shape index: {}]
  %s3 = inlined_call_operand.hbm [shape: f32[16,512], index: 3, kind: output, shape index: {}]
  %s4 = sld [smem:[#allocation0]]
  $region22: #{tpu_custom_call.1} parent=0
    _
  %s6 = ssub.s32 1, %s4
  %s7 = scalar_select 0, %s6, %s4
  $region1: #{tpu_custom_call.1} parent=0
    #allocation2 [shape = 'u8[32768]{0}', space=vmem, size = 0x8000, scoped, tag = 'output window, operand 0, single buffered']
    #allocation3 [shape = 's32[1]{0}', space=sflag, size = 0x4, scoped, tag = 'scoped memory for tpu_custom_call.1']
    %8 = vsyncpa [#allocation3], 0
    // Predicated region
    $region2: #{tpu_custom_call.1} parent=1 // pred_check
      _
    $region3: #{tpu_custom_call.1} parent=1 // pred_check_branch
      %10 = sbr.rel (0) target = $region5
    $region4: #{tpu_custom_call.1} parent=1 // pred_region
      _
    $region5: #{tpu_custom_call.1} parent=1 // pred_fallthru
      _
    // Predicated region
    $region6: #{tpu_custom_call.1} parent=1 // pred_check
      _
    $region7: #{tpu_custom_call.1} parent=1 // pred_check_branch
      %12 = sbr.rel (0) target = $region9
    $region8: #{tpu_custom_call.1} parent=1 // pred_region
      _
    $region9: #{tpu_custom_call.1} parent=1 // pred_fallthru
      _
    // Predicated region
    $region10: #{tpu_custom_call.1} parent=1 // pred_check
      _
    $region11: #{tpu_custom_call.1} parent=1 // pred_check_branch
      %14 = sbr.rel (0) target = $region13
    $region12: #{tpu_custom_call.1} parent=1 // pred_region
      _
    $region13: #{tpu_custom_call.1} parent=1 // pred_fallthru
      _
    %v16 = vld [vmem:[%s1] sm:$0xf]
    %v18 = vunpack.c.l.b16 %v16
    %v19 = vpack.c.b16 %v18, %v18
    %vm20 = vcmask 1043456
    %v23 = vsel %vm20, %v16, %v19
    %v24 = vld [vmem:[%s0] sm:$0xf]
    %v25 = vld [vmem:[%s0 + $0x4] sm:$0xf]
    %v27 = vunpack.c.l.b16 %v23
    %v28 = vunpack.c.h.b16 %v23
    %v29 = vpack.c.b16 %v27, %v27
    %v30 = vpack.c.b16 %v28, %v28
    %v33 = vadd.bf16 %v24, %v29
    %v34 = vadd.bf16 %v25, %v30
    %v35 = vld [vmem:[%s2] sm:$0xf]
    %v36 = vld [vmem:[%s2 + $0x4] sm:$0xf]
    %v37 = vld [vmem:[%s2 + $0x8] sm:$0xf]
    %v38 = vld [vmem:[%s2 + $0xc] sm:$0xf]
    %v39 = vld [vmem:[%s2 + $0x10] sm:$0xf]
    %v40 = vld [vmem:[%s2 + $0x14] sm:$0xf]
    %v41 = vld [vmem:[%s2 + $0x18] sm:$0xf]
    %v42 = vld [vmem:[%s2 + $0x1c] sm:$0xf]
    %v43 = vld [vmem:[%s2 + $0x20] sm:$0xf]
    %v44 = vld [vmem:[%s2 + $0x24] sm:$0xf]
    %v45 = vld [vmem:[%s2 + $0x28] sm:$0xf]
    %v46 = vld [vmem:[%s2 + $0x2c] sm:$0xf]
    %v47 = vld [vmem:[%s2 + $0x30] sm:$0xf]
    %v48 = vld [vmem:[%s2 + $0x34] sm:$0xf]
    %v49 = vld [vmem:[%s2 + $0x38] sm:$0xf]
    %v50 = vld [vmem:[%s2 + $0x3c] sm:$0xf]
    %v51 = vld [vmem:[%s2 + $0x40] sm:$0xf]
    %v52 = vld [vmem:[%s2 + $0x44] sm:$0xf]
    %v53 = vld [vmem:[%s2 + $0x48] sm:$0xf]
    %v54 = vld [vmem:[%s2 + $0x4c] sm:$0xf]
    %v55 = vld [vmem:[%s2 + $0x50] sm:$0xf]
    %v56 = vld [vmem:[%s2 + $0x54] sm:$0xf]
    %v57 = vld [vmem:[%s2 + $0x58] sm:$0xf]
    %v58 = vld [vmem:[%s2 + $0x5c] sm:$0xf]
    %v59 = vld [vmem:[%s2 + $0x60] sm:$0xf]
    %v60 = vld [vmem:[%s2 + $0x64] sm:$0xf]
    %v61 = vld [vmem:[%s2 + $0x68] sm:$0xf]
    %v62 = vld [vmem:[%s2 + $0x6c] sm:$0xf]
    %v63 = vld [vmem:[%s2 + $0x70] sm:$0xf]
    %v64 = vld [vmem:[%s2 + $0x74] sm:$0xf]
    %v65 = vld [vmem:[%s2 + $0x78] sm:$0xf]
    %v66 = vld [vmem:[%s2 + $0x7c] sm:$0xf]
    %v67 = vld [vmem:[%s2 + $0x80] sm:$0xf]
    %v68 = vld [vmem:[%s2 + $0x84] sm:$0xf]
    %v69 = vld [vmem:[%s2 + $0x88] sm:$0xf]
    %v70 = vld [vmem:[%s2 + $0x8c] sm:$0xf]
    %v71 = vld [vmem:[%s2 + $0x90] sm:$0xf]
    %v72 = vld [vmem:[%s2 + $0x94] sm:$0xf]
    %v73 = vld [vmem:[%s2 + $0x98] sm:$0xf]
    %v74 = vld [vmem:[%s2 + $0x9c] sm:$0xf]
    %v75 = vld [vmem:[%s2 + $0xa0] sm:$0xf]
    %v76 = vld [vmem:[%s2 + $0xa4] sm:$0xf]
    %v77 = vld [vmem:[%s2 + $0xa8] sm:$0xf]
    %v78 = vld [vmem:[%s2 + $0xac] sm:$0xf]
    %v79 = vld [vmem:[%s2 + $0xb0] sm:$0xf]
    %v80 = vld [vmem:[%s2 + $0xb4] sm:$0xf]
    %v81 = vld [vmem:[%s2 + $0xb8] sm:$0xf]
    %v82 = vld [vmem:[%s2 + $0xbc] sm:$0xf]
    %v83 = vld [vmem:[%s2 + $0xc0] sm:$0xf]
    %v84 = vld [vmem:[%s2 + $0xc4] sm:$0xf]
    %v85 = vld [vmem:[%s2 + $0xc8] sm:$0xf]
    %v86 = vld [vmem:[%s2 + $0xcc] sm:$0xf]
    %v87 = vld [vmem:[%s2 + $0xd0] sm:$0xf]
    %v88 = vld [vmem:[%s2 + $0xd4] sm:$0xf]
    %v89 = vld [vmem:[%s2 + $0xd8] sm:$0xf]
    %v90 = vld [vmem:[%s2 + $0xdc] sm:$0xf]
    %v91 = vld [vmem:[%s2 + $0xe0] sm:$0xf]
    %v92 = vld [vmem:[%s2 + $0xe4] sm:$0xf]
    %v93 = vld [vmem:[%s2 + $0xe8] sm:$0xf]
    %v94 = vld [vmem:[%s2 + $0xec] sm:$0xf]
    %v95 = vld [vmem:[%s2 + $0xf0] sm:$0xf]
    %v96 = vld [vmem:[%s2 + $0xf4] sm:$0xf]
    %v97 = vld [vmem:[%s2 + $0xf8] sm:$0xf]
    %v98 = vld [vmem:[%s2 + $0xfc] sm:$0xf]
    %v101 = vunpack.c.l.b16 %v33
    %v102 = vunpack.c.l.b16 %v34
    %v103 = vpack.c.b16 %v102, %v101
    %v168 = vunpack.c.l.b16 %v35
    %v169 = vunpack.c.l.b16 %v36
    %v170 = vunpack.c.l.b16 %v37
    %v171 = vunpack.c.l.b16 %v38
    %v172 = vunpack.c.l.b16 %v39
    %v173 = vunpack.c.l.b16 %v40
    %v174 = vunpack.c.l.b16 %v41
    %v175 = vunpack.c.l.b16 %v42
    %v176 = vunpack.c.l.b16 %v43
    %v177 = vunpack.c.l.b16 %v44
    %v178 = vunpack.c.l.b16 %v45
    %v179 = vunpack.c.l.b16 %v46
    %v180 = vunpack.c.l.b16 %v47
    %v181 = vunpack.c.l.b16 %v48
    %v182 = vunpack.c.l.b16 %v49
    %v183 = vunpack.c.l.b16 %v50
    %v184 = vunpack.c.l.b16 %v51
    %v185 = vunpack.c.l.b16 %v52
    %v186 = vunpack.c.l.b16 %v53
    %v187 = vunpack.c.l.b16 %v54
    %v188 = vunpack.c.l.b16 %v55
    %v189 = vunpack.c.l.b16 %v56
    %v190 = vunpack.c.l.b16 %v57
    %v191 = vunpack.c.l.b16 %v58
    %v192 = vunpack.c.l.b16 %v59
    %v193 = vunpack.c.l.b16 %v60
    %v194 = vunpack.c.l.b16 %v61
    %v195 = vunpack.c.l.b16 %v62
    %v196 = vunpack.c.l.b16 %v63
    %v197 = vunpack.c.l.b16 %v64
    %v198 = vunpack.c.l.b16 %v65
    %v199 = vunpack.c.l.b16 %v66
    %v200 = vunpack.c.l.b16 %v67
    %v201 = vunpack.c.l.b16 %v68
    %v202 = vunpack.c.l.b16 %v69
    %v203 = vunpack.c.l.b16 %v70
    %v204 = vunpack.c.l.b16 %v71
    %v205 = vunpack.c.l.b16 %v72
    %v206 = vunpack.c.l.b16 %v73
    %v207 = vunpack.c.l.b16 %v74
    %v208 = vunpack.c.l.b16 %v75
    %v209 = vunpack.c.l.b16 %v76
    %v210 = vunpack.c.l.b16 %v77
    %v211 = vunpack.c.l.b16 %v78
    %v212 = vunpack.c.l.b16 %v79
    %v213 = vunpack.c.l.b16 %v80
    %v214 = vunpack.c.l.b16 %v81
    %v215 = vunpack.c.l.b16 %v82
    %v216 = vunpack.c.l.b16 %v83
    %v217 = vunpack.c.l.b16 %v84
    %v218 = vunpack.c.l.b16 %v85
    %v219 = vunpack.c.l.b16 %v86
    %v220 = vunpack.c.l.b16 %v87
    %v221 = vunpack.c.l.b16 %v88
    %v222 = vunpack.c.l.b16 %v89
    %v223 = vunpack.c.l.b16 %v90
    %v224 = vunpack.c.l.b16 %v91
    %v225 = vunpack.c.l.b16 %v92
    %v226 = vunpack.c.l.b16 %v93
    %v227 = vunpack.c.l.b16 %v94
    %v228 = vunpack.c.l.b16 %v95
    %v229 = vunpack.c.l.b16 %v96
    %v230 = vunpack.c.l.b16 %v97
    %v231 = vunpack.c.l.b16 %v98
    %v232 = vpack.c.b16 %v169, %v168
    %v233 = vpack.c.b16 %v171, %v170
    %v234 = vpack.c.b16 %v173, %v172
    %v235 = vpack.c.b16 %v175, %v174
    %v236 = vpack.c.b16 %v177, %v176
    %v237 = vpack.c.b16 %v179, %v178
    %v238 = vpack.c.b16 %v181, %v180
    %v239 = vpack.c.b16 %v183, %v182
    %v240 = vpack.c.b16 %v185, %v184
    %v241 = vpack.c.b16 %v187, %v186
    %v242 = vpack.c.b16 %v189, %v188
    %v243 = vpack.c.b16 %v191, %v190
    %v244 = vpack.c.b16 %v193, %v192
    %v245 = vpack.c.b16 %v195, %v194
    %v246 = vpack.c.b16 %v197, %v196
    %v247 = vpack.c.b16 %v199, %v198
    %v248 = vpack.c.b16 %v201, %v200
    %v249 = vpack.c.b16 %v203, %v202
    %v250 = vpack.c.b16 %v205, %v204
    %v251 = vpack.c.b16 %v207, %v206
    %v252 = vpack.c.b16 %v209, %v208
    %v253 = vpack.c.b16 %v211, %v210
    %v254 = vpack.c.b16 %v213, %v212
    %v255 = vpack.c.b16 %v215, %v214
    %v256 = vpack.c.b16 %v217, %v216
    %v257 = vpack.c.b16 %v219, %v218
    %v258 = vpack.c.b16 %v221, %v220
    %v259 = vpack.c.b16 %v223, %v222
    %v260 = vpack.c.b16 %v225, %v224
    %v261 = vpack.c.b16 %v227, %v226
    %v262 = vpack.c.b16 %v229, %v228
    %v263 = vpack.c.b16 %v231, %v230
    %vm264 = vcmask 261120
    %v266 = vsel %vm264, %v103, 0
    %v269 = vsel %vm264, %v232, 0
    %v272 = vsel %vm264, %v233, 0
    %v275 = vsel %vm264, %v234, 0
    %v278 = vsel %vm264, %v235, 0
    %v281 = vsel %vm264, %v236, 0
    %v284 = vsel %vm264, %v237, 0
    %v287 = vsel %vm264, %v238, 0
    %v290 = vsel %vm264, %v239, 0
    %v293 = vsel %vm264, %v240, 0
    %v296 = vsel %vm264, %v241, 0
    %v299 = vsel %vm264, %v242, 0
    %v302 = vsel %vm264, %v243, 0
    %v305 = vsel %vm264, %v244, 0
    %v308 = vsel %vm264, %v245, 0
    %v311 = vsel %vm264, %v246, 0
    %v314 = vsel %vm264, %v247, 0
    %v317 = vsel %vm264, %v248, 0
    %v320 = vsel %vm264, %v249, 0
    %v323 = vsel %vm264, %v250, 0
    %v326 = vsel %vm264, %v251, 0
    %v329 = vsel %vm264, %v252, 0
    %v332 = vsel %vm264, %v253, 0
    %v335 = vsel %vm264, %v254, 0
    %v338 = vsel %vm264, %v255, 0
    %v341 = vsel %vm264, %v256, 0
    %v344 = vsel %vm264, %v257, 0
    %v347 = vsel %vm264, %v258, 0
    %v350 = vsel %vm264, %v259, 0
    %v353 = vsel %vm264, %v260, 0
    %v356 = vsel %vm264, %v261, 0
    %v359 = vsel %vm264, %v262, 0
    %v362 = vsel %vm264, %v263, 0
    %364 = vmatprep.subr.bf16.mxu0 0
    %365 = vmatpush1.bf16.xpose.msra.mxu0 %v290
    %366 = vmatprep.subr.bf16.mxu0 0
    %367 = vmatpush1.bf16.xpose.msra.mxu0 %v287
    %368 = vmatprep.subr.bf16.mxu0 0
    %369 = vmatpush1.bf16.xpose.msra.mxu0 %v284
    %370 = vmatprep.subr.bf16.mxu0 0
    %371 = vmatpush1.bf16.xpose.msra.mxu0 %v281
    %372 = vmatprep.subr.bf16.mxu0 0
    %373 = vmatpush1.bf16.xpose.msra.mxu0 %v278
    %374 = vmatprep.subr.bf16.mxu0 0
    %375 = vmatpush1.bf16.xpose.msra.mxu0 %v275
    %376 = vmatprep.subr.bf16.mxu0 0
    %377 = vmatpush1.bf16.xpose.msra.mxu0 %v272
    %378 = vmatprep.subr.bf16.mxu0 0
    %379 = vmatpush1.bf16.xpose.msra.mxu0 %v269
    %380 = vmatprep.subr.bf16.mxu0 0
    %381 = vmatpush2.bf16.xpose.msra.mxu0 %v314
    %382 = vmatprep.subr.bf16.mxu0 0
    %383 = vmatpush2.bf16.xpose.msra.mxu0 %v311
    %384 = vmatprep.subr.bf16.mxu0 0
    %385 = vmatpush2.bf16.xpose.msra.mxu0 %v308
    %386 = vmatprep.subr.bf16.mxu0 0
    %387 = vmatpush2.bf16.xpose.msra.mxu0 %v305
    %388 = vmatprep.subr.bf16.mxu0 0
    %389 = vmatpush2.bf16.xpose.msra.mxu0 %v302
    %390 = vmatprep.subr.bf16.mxu0 0
    %391 = vmatpush2.bf16.xpose.msra.mxu0 %v299
    %392 = vmatprep.subr.bf16.mxu0 0
    %393 = vmatpush2.bf16.xpose.msra.mxu0 %v296
    %394 = vmatprep.subr.bf16.mxu0 0
    %395 = vmatpush2.bf16.xpose.msra.mxu0 %v293
    %396 = vmatprep.mubr.bf16.mxu0 0
    %397 = vmatmul.mubr.bf16.gmra.mxu0 %v266
    %v398 = vpop.f32.mrf.mxu0
    %v399 = vadd.f32 0.0, %v398
    %v400 = vpop.f32.mrf.mxu0
    %v401 = vadd.f32 0.0, %v400
    %v402 = vpop.f32.mrf.mxu0
    %v403 = vadd.f32 0.0, %v402
    %v404 = vpop.f32.mrf.mxu0
    %v405 = vadd.f32 0.0, %v404
    %406 = vdwg.mxu0
    %407 = vmatprep.subr.bf16.mxu0 0
    %408 = vmatpush1.bf16.xpose.msra.mxu0 %v338
    %409 = vmatprep.subr.bf16.mxu0 0
    %410 = vmatpush1.bf16.xpose.msra.mxu0 %v335
    %411 = vmatprep.subr.bf16.mxu0 0
    %412 = vmatpush1.bf16.xpose.msra.mxu0 %v332
    %413 = vmatprep.subr.bf16.mxu0 0
    %414 = vmatpush1.bf16.xpose.msra.mxu0 %v329
    %415 = vmatprep.subr.bf16.mxu0 0
    %416 = vmatpush1.bf16.xpose.msra.mxu0 %v326
    %417 = vmatprep.subr.bf16.mxu0 0
    %418 = vmatpush1.bf16.xpose.msra.mxu0 %v323
    %419 = vmatprep.subr.bf16.mxu0 0
    %420 = vmatpush1.bf16.xpose.msra.mxu0 %v320
    %421 = vmatprep.subr.bf16.mxu0 0
    %422 = vmatpush1.bf16.xpose.msra.mxu0 %v317
    %423 = vmatprep.subr.bf16.mxu0 0
    %424 = vmatpush2.bf16.xpose.msra.mxu0 %v362
    %425 = vmatprep.subr.bf16.mxu0 0
    %426 = vmatpush2.bf16.xpose.msra.mxu0 %v359
    %427 = vmatprep.subr.bf16.mxu0 0
    %428 = vmatpush2.bf16.xpose.msra.mxu0 %v356
    %429 = vmatprep.subr.bf16.mxu0 0
    %430 = vmatpush2.bf16.xpose.msra.mxu0 %v353
    %431 = vmatprep.subr.bf16.mxu0 0
    %432 = vmatpush2.bf16.xpose.msra.mxu0 %v350
    %433 = vmatprep.subr.bf16.mxu0 0
    %434 = vmatpush2.bf16.xpose.msra.mxu0 %v347
    %435 = vmatprep.subr.bf16.mxu0 0
    %436 = vmatpush2.bf16.xpose.msra.mxu0 %v344
    %437 = vmatprep.subr.bf16.mxu0 0
    %438 = vmatpush2.bf16.xpose.msra.mxu0 %v341
    %439 = vmatprep.mubr.bf16.mxu0 0
    %440 = vmatmul.mubr.bf16.gmra.mxu0 %v266
    %v441 = vpop.f32.mrf.mxu0
    %v442 = vadd.f32 0.0, %v441
    %v443 = vpop.f32.mrf.mxu0
    %v444 = vadd.f32 0.0, %v443
    %v445 = vpop.f32.mrf.mxu0
    %v446 = vadd.f32 0.0, %v445
    %v447 = vpop.f32.mrf.mxu0
    %v448 = vadd.f32 0.0, %v447
    %449 = vdwg.mxu0
    %450 = vst [vmem:[#allocation2] sm:$0xff] %v399
    %451 = vst [vmem:[#allocation2 + $0x8] sm:$0xff] %v401
    %452 = vst [vmem:[#allocation2 + $0x10] sm:$0xff] %v442
    %453 = vst [vmem:[#allocation2 + $0x18] sm:$0xff] %v444
    %454 = vst [vmem:[#allocation2 + $0x20] sm:$0xff] %v403
    %455 = vst [vmem:[#allocation2 + $0x28] sm:$0xff] %v405
    %456 = vst [vmem:[#allocation2 + $0x30] sm:$0xff] %v446
    %457 = vst [vmem:[#allocation2 + $0x38] sm:$0xff] %v448
    // Predicated region
    $region14: #{tpu_custom_call.1} parent=1 // pred_check
      _
    $region15: #{tpu_custom_call.1} parent=1 // pred_check_branch
      %459 = sbr.rel (0) target = $region17
    $region16: #{tpu_custom_call.1} parent=1 // pred_region
      %s461 = ssub.s32 1024, 1024
      %462 = vsyncadd [#allocation3], %s461
      %s463 = sshll.u32 [#allocation2], 4
      %s464 = int_to_ptr.vmem [resolvable:$true] %s463
      %469 = dma.vmem_to_hbm [thread:$0]  %s464, 1024, %s3, [#allocation3], 512, 512, 32
    $region17: #{tpu_custom_call.1} parent=1 // pred_fallthru
      _
    // Predicated region
    $region18: #{tpu_custom_call.1} parent=1 // pred_check
      _
    $region19: #{tpu_custom_call.1} parent=1 // pred_check_branch
      %471 = sbr.rel (0) target = $region21
    $region20: #{tpu_custom_call.1} parent=1 // pred_region
      %472 = dma.done [#allocation3], 1024
    $region21: #{tpu_custom_call.1} parent=1 // pred_fallthru
      _
    %473 = vsyncpa [#allocation3], 1

</llo_original>
